<compile_context>
chip_gen: v7x
topology: tpu7x:2x2x1
jax: 0.10.0
libtpu: 0.0.40
codegen_flags: <defaults>
</compile_context>

<pallas_src>
import jax
import jax.numpy as jnp
from jax.experimental import pallas as pl
from jax.experimental.pallas import tpu as pltpu


def _additive_attention_kernel(q_ref, k_ref, v_ref,
                               wq_ref, wk_ref, b1_ref, w2_ref,
                               ctx_ref, attn_ref):
    q = q_ref[...]                              # (Bt, H)
    k = k_ref[...]                              # (Bt, S, H)
    v = v_ref[...]                              # (Bt, S, H)
    wq = wq_ref[...]                            # (H, H)
    wk = wk_ref[...]                            # (H, H)
    b1 = b1_ref[...].astype(jnp.float32)        # (1, H)
    w2 = w2_ref[...].astype(jnp.float32)        # (1, H)  (row form of (H, 1))

    bt, s, h = k.shape

    # concat([q_expanded, k], -1) @ W1  ==  q @ Wq + k @ Wk
    # One large MXU matmul with M = Bt*S rows, accumulated in f32.
    k_flat = k.reshape(bt * s, h)                                   # (Bt*S, H)
    hk = jnp.dot(k_flat, wk, preferred_element_type=jnp.float32)    # (Bt*S, H)
    hq = jnp.dot(q, wq, preferred_element_type=jnp.float32)         # (Bt, H)

    hid = hk.reshape(bt, s, h) + hq[:, None, :] + b1[None, :, :]    # (Bt, S, H)
    hid = jnp.maximum(hid, 0.0)                                     # ReLU (f32)

    # Second linear (H -> 1) on the VPU: scores[b, s] = sum_h hid[b,s,h]*w2[h].
    # Result is (Bt, S) with the sequence axis on lanes.
    scores = jnp.sum(hid * w2[None, :, :], axis=-1)                 # (Bt, S)
    # b2 is intentionally omitted: softmax is shift-invariant, so the scalar
    # bias cannot change the attention weights or the context.

    # Softmax over seq_len (lane axis).
    m = jnp.max(scores, axis=-1, keepdims=True)                     # (Bt, 1)
    e = jnp.exp(scores - m)
    denom = jnp.sum(e, axis=-1, keepdims=True)                      # (Bt, 1)
    attn = e * pl.reciprocal(denom, approx=False)                   # (Bt, S)

    # context[b, :] = sum_s attn[b, s] * v[b, s, :]   (VPU mult + reduce;
    # avoids the M=1 matmul and the transpose of a lane-sparse (S,1) tile).
    ctx = jnp.sum(attn[:, :, None] * v.astype(jnp.float32), axis=1)  # (Bt, H)

    ctx_ref[...] = ctx.astype(ctx_ref.dtype)
    attn_ref[...] = attn.astype(attn_ref.dtype)


def _pick_block_b(batch, seq_len, hidden, itemsize):
    """Batch-tile heuristic: use >= 8 sublanes, grow while the batch stays
    divisible, keep at least 2 grid steps (megacore on v7x) and a modest
    K/V working set (also fits v7x's smaller VMEM)."""
    if batch % 8 != 0:
        return batch                      # block == full dim is always legal
    bt = 8
    while (batch % (bt * 2) == 0 and (batch // (bt * 2)) >= 2
           and bt * seq_len < 1024
           and 4 * (bt * 2) * seq_len * hidden * itemsize < (8 << 20)):
        bt *= 2
    return bt


def additive_attention(queries, keys, values, w1, b1, w2, b2=None, *,
                       block_b=None):
    """queries: (B, H); keys/values: (B, S, H); w1: (2H, H); b1: (H,);
       w2: (H, 1); b2: (1,) (unused — softmax shift invariance).
       Returns (context (B, 1, H), attention_weights (B, S, 1))."""
    B, S, H = keys.shape
    assert queries.shape == (B, H)
    assert values.shape == (B, S, H)
    assert w1.shape == (2 * H, H) and b1.shape == (H,)
    assert w2.shape == (H, 1)

    # Pre-split W1 so the kernel never slices weights inside VMEM.
    wq = w1[:H, :]
    wk = w1[H:, :]
    b1_2d = b1.reshape(1, H)
    w2_row = w2.reshape(1, H)            # (H, 1) -> lane-dense row vector

    if block_b is None:
        block_b = _pick_block_b(B, S, H, jnp.dtype(keys.dtype).itemsize)
    assert B % block_b == 0
    grid = (B // block_b,)

    out_shapes = (
        jax.ShapeDtypeStruct((B, H), queries.dtype),   # context (lane-dense)
        jax.ShapeDtypeStruct((B, S), queries.dtype),   # attn, seq on lanes
    )
    in_specs = [
        pl.BlockSpec((block_b, H), lambda i: (i, 0)),        # queries
        pl.BlockSpec((block_b, S, H), lambda i: (i, 0, 0)),  # keys
        pl.BlockSpec((block_b, S, H), lambda i: (i, 0, 0)),  # values
        pl.BlockSpec((H, H), lambda i: (0, 0)),              # Wq
        pl.BlockSpec((H, H), lambda i: (0, 0)),              # Wk
        pl.BlockSpec((1, H), lambda i: (0, 0)),              # b1
        pl.BlockSpec((1, H), lambda i: (0, 0)),              # w2 row
    ]
    out_specs = (
        pl.BlockSpec((block_b, H), lambda i: (i, 0)),        # context
        pl.BlockSpec((block_b, S), lambda i: (i, 0)),        # attention weights
    )

    ctx, attn = pl.pallas_call(
        _additive_attention_kernel,
        out_shape=out_shapes,
        grid_spec=pltpu.PrefetchScalarGridSpec(
            num_scalar_prefetch=0,
            grid=grid,
            in_specs=in_specs,
            out_specs=out_specs,
        ),
        compiler_params=pltpu.CompilerParams(
            dimension_semantics=("parallel",)),
    )(queries, keys, values, wq, wk, b1_2d, w2_row)

    # Reshape to the PyTorch module's output shapes in the (cheap) wrapper.
    return ctx.reshape(B, 1, H), attn.reshape(B, S, 1)


def _reference(queries, keys, values, w1, b1, w2, b2):
    B, S, H = keys.shape
    expanded_q = jnp.broadcast_to(queries[:, None, :], (B, S, H))
    concat = jnp.concatenate([expanded_q, keys], axis=2)          # (B, S, 2H)
    h = jnp.maximum(concat @ w1 + b1, 0.0)                        # (B, S, H)
    scores = (h @ w2 + b2).reshape(B, S)                          # (B, S)
    attn = jax.nn.softmax(scores, axis=1)[..., None]              # (B, S, 1)
    ctx = jnp.einsum("bsx,bsh->bxh", attn, values)                # (B, 1, H)
    return ctx, attn


if __name__ == "__main__":
    B, S, H = 16, 8, 32       # small shapes; B=16 gives 2 batch tiles of 8
    key = jax.random.PRNGKey(0)
    kq, kk, kv, kw1, kb1, kw2, kb2 = jax.random.split(key, 7)

    queries = jax.random.normal(kq, (B, H), dtype=jnp.float32)
    keys = jax.random.normal(kk, (B, S, H), dtype=jnp.float32)
    values = jax.random.normal(kv, (B, S, H), dtype=jnp.float32)

    # deterministic parameter init (PyTorch-style uniform bounds)
    bound1 = 1.0 / jnp.sqrt(2.0 * H)
    bound2 = 1.0 / jnp.sqrt(float(H))
    w1 = jax.random.uniform(kw1, (2 * H, H), jnp.float32, -bound1, bound1)
    b1 = jax.random.uniform(kb1, (H,), jnp.float32, -bound1, bound1)
    w2 = jax.random.uniform(kw2, (H, 1), jnp.float32, -bound2, bound2)
    b2 = jax.random.uniform(kb2, (1,), jnp.float32, -bound2, bound2)

    ctx, attn = additive_attention(queries, keys, values, w1, b1, w2, b2)
    jax.block_until_ready((ctx, attn))

    ctx_ref, attn_ref = _reference(queries, keys, values, w1, b1, w2, b2)
    assert ctx.shape == (B, 1, H) and attn.shape == (B, S, 1)
    assert jnp.allclose(ctx, ctx_ref, atol=1e-5, rtol=1e-5)
    assert jnp.allclose(attn, attn_ref, atol=1e-5, rtol=1e-5)

    print("KERNEL_OK")
</pallas_src>

<mosaic_0001>
module attributes {stable_mosaic.version = 11 : i64} {
  func.func @_additive_attention_kernel(%arg0: i32, %arg1: memref<8x32xf32, #tpu.memory_space<vmem>>, %arg2: memref<8x8x32xf32, #tpu.memory_space<vmem>>, %arg3: memref<8x8x32xf32, #tpu.memory_space<vmem>>, %arg4: memref<32x32xf32, #tpu.memory_space<vmem>>, %arg5: memref<32x32xf32, #tpu.memory_space<vmem>>, %arg6: memref<1x32xf32, #tpu.memory_space<vmem>>, %arg7: memref<1x32xf32, #tpu.memory_space<vmem>>, %arg8: memref<8x32xf32, #tpu.memory_space<vmem>>, %arg9: memref<8x8xf32, #tpu.memory_space<vmem>>) attributes {dimension_semantics = [#tpu.dimension_semantics<parallel>], iteration_bounds = array<i64: 2>, scalar_prefetch = 0 : i64, scratch_operands = 0 : i64, tpu.core_type = #tpu.core_type<tc>, window_params = [{transform_indices = @transform_0, window_bounds = array<i64: 8, 32>}, {transform_indices = @transform_1, window_bounds = array<i64: 8, 8, 32>}, {transform_indices = @transform_2, window_bounds = array<i64: 8, 8, 32>}, {pipeline_mode = #tpu.pipeline_mode<synchronous>, transform_indices = @transform_3, window_bounds = array<i64: 32, 32>}, {pipeline_mode = #tpu.pipeline_mode<synchronous>, transform_indices = @transform_4, window_bounds = array<i64: 32, 32>}, {pipeline_mode = #tpu.pipeline_mode<synchronous>, transform_indices = @transform_5, window_bounds = array<i64: 1, 32>}, {pipeline_mode = #tpu.pipeline_mode<synchronous>, transform_indices = @transform_6, window_bounds = array<i64: 1, 32>}, {transform_indices = @transform_7, window_bounds = array<i64: 8, 32>}, {transform_indices = @transform_8, window_bounds = array<i64: 8, 8>}]} {
    %c0 = arith.constant 0 : index
    %c0_0 = arith.constant 0 : index
    %0 = vector.load %arg1[%c0, %c0_0] : memref<8x32xf32, #tpu.memory_space<vmem>>, vector<8x32xf32>
    %c0_1 = arith.constant 0 : index
    %c0_2 = arith.constant 0 : index
    %c0_3 = arith.constant 0 : index
    %1 = vector.load %arg2[%c0_1, %c0_2, %c0_3] : memref<8x8x32xf32, #tpu.memory_space<vmem>>, vector<8x8x32xf32>
    %c0_4 = arith.constant 0 : index
    %c0_5 = arith.constant 0 : index
    %c0_6 = arith.constant 0 : index
    %2 = vector.load %arg3[%c0_4, %c0_5, %c0_6] : memref<8x8x32xf32, #tpu.memory_space<vmem>>, vector<8x8x32xf32>
    %c0_7 = arith.constant 0 : index
    %c0_8 = arith.constant 0 : index
    %3 = vector.load %arg4[%c0_7, %c0_8] : memref<32x32xf32, #tpu.memory_space<vmem>>, vector<32x32xf32>
    %c0_9 = arith.constant 0 : index
    %c0_10 = arith.constant 0 : index
    %4 = vector.load %arg5[%c0_9, %c0_10] : memref<32x32xf32, #tpu.memory_space<vmem>>, vector<32x32xf32>
    %c0_11 = arith.constant 0 : index
    %c0_12 = arith.constant 0 : index
    %5 = vector.load %arg6[%c0_11, %c0_12] : memref<1x32xf32, #tpu.memory_space<vmem>>, vector<1x32xf32>
    %c0_13 = arith.constant 0 : index
    %c0_14 = arith.constant 0 : index
    %6 = vector.load %arg7[%c0_13, %c0_14] : memref<1x32xf32, #tpu.memory_space<vmem>>, vector<1x32xf32>
    %7 = vector.shape_cast %1 : vector<8x8x32xf32> to vector<64x32xf32>
    %cst = arith.constant dense<0.000000e+00> : vector<64x32xf32>
    %8 = tpu.matmul %7, %4, %cst {dimension_numbers = #tpu.dot_dimension_numbers<[1], [0], [0], [1], [0, 0, 1, 1], [], []>} : vector<64x32xf32>, vector<32x32xf32>, vector<64x32xf32> -> vector<64x32xf32>
    %cst_15 = arith.constant dense<0.000000e+00> : vector<8x32xf32>
    %9 = tpu.matmul %0, %3, %cst_15 {dimension_numbers = #tpu.dot_dimension_numbers<[1], [0], [0], [1], [0, 0, 1, 1], [], []>} : vector<8x32xf32>, vector<32x32xf32>, vector<8x32xf32> -> vector<8x32xf32>
    %10 = vector.shape_cast %8 : vector<64x32xf32> to vector<8x8x32xf32>
    %11 = vector.shape_cast %9 : vector<8x32xf32> to vector<8x1x32xf32>
    %12 = vector.broadcast %11 : vector<8x1x32xf32> to vector<8x8x32xf32>
    %13 = arith.addf %10, %12 : vector<8x8x32xf32>
    %14 = vector.shape_cast %5 : vector<1x32xf32> to vector<1x1x32xf32>
    %15 = vector.broadcast %14 : vector<1x1x32xf32> to vector<8x8x32xf32>
    %16 = arith.addf %13, %15 : vector<8x8x32xf32>
    %cst_16 = arith.constant 0.000000e+00 : f32
    %17 = vector.broadcast %cst_16 : f32 to vector<8x8x32xf32>
    %18 = arith.maximumf %16, %17 : vector<8x8x32xf32>
    %19 = vector.shape_cast %6 : vector<1x32xf32> to vector<1x1x32xf32>
    %20 = vector.broadcast %19 : vector<1x1x32xf32> to vector<8x8x32xf32>
    %21 = arith.mulf %18, %20 : vector<8x8x32xf32>
    %cst_17 = arith.constant dense<0.000000e+00> : vector<8x8xf32>
    %22 = vector.multi_reduction <add>, %21, %cst_17 [2] : vector<8x8x32xf32> to vector<8x8xf32>
    %cst_18 = arith.constant dense<0xFF800000> : vector<8xf32>
    %23 = vector.multi_reduction <maximumf>, %22, %cst_18 [1] : vector<8x8xf32> to vector<8xf32>
    %24 = vector.shape_cast %23 : vector<8xf32> to vector<8x1xf32>
    %25 = vector.broadcast %24 : vector<8x1xf32> to vector<8x8xf32>
    %26 = arith.subf %22, %25 : vector<8x8xf32>
    %27 = math.exp %26 : vector<8x8xf32>
    %cst_19 = arith.constant dense<0.000000e+00> : vector<8xf32>
    %28 = vector.multi_reduction <add>, %27, %cst_19 [1] : vector<8x8xf32> to vector<8xf32>
    %29 = vector.shape_cast %28 : vector<8xf32> to vector<8x1xf32>
    %30 = tpu.reciprocal %29 : vector<8x1xf32> -> vector<8x1xf32>
    %31 = vector.broadcast %30 : vector<8x1xf32> to vector<8x8xf32>
    %32 = arith.mulf %27, %31 : vector<8x8xf32>
    %33 = vector.shape_cast %32 : vector<8x8xf32> to vector<8x8x1xf32>
    %34 = vector.broadcast %33 : vector<8x8x1xf32> to vector<8x8x32xf32>
    %35 = arith.mulf %34, %2 : vector<8x8x32xf32>
    %cst_20 = arith.constant dense<0.000000e+00> : vector<8x32xf32>
    %36 = vector.multi_reduction <add>, %35, %cst_20 [1] : vector<8x8x32xf32> to vector<8x32xf32>
    %c0_21 = arith.constant 0 : index
    %c0_22 = arith.constant 0 : index
    %37 = vector.load %arg8[%c0_21, %c0_22] : memref<8x32xf32, #tpu.memory_space<vmem>>, vector<8x32xf32>
    tpu.vector_store %arg8[%c0_21, %c0_22], %36 {strides = array<i32>} : memref<8x32xf32, #tpu.memory_space<vmem>>, vector<8x32xf32>,
    %c0_23 = arith.constant 0 : index
    %c0_24 = arith.constant 0 : index
    %38 = vector.load %arg9[%c0_23, %c0_24] : memref<8x8xf32, #tpu.memory_space<vmem>>, vector<8x8xf32>
    tpu.vector_store %arg9[%c0_23, %c0_24], %32 {strides = array<i32>} : memref<8x8xf32, #tpu.memory_space<vmem>>, vector<8x8xf32>,
    return
  }
  func.func @transform_0(%arg0: i32) -> (i32, i32) {
    %c0_i32 = arith.constant 0 : i32
    %c0_i32_0 = arith.constant 0 : i32
    return %arg0, %c0_i32 : i32, i32
  }
  func.func @transform_1(%arg0: i32) -> (i32, i32, i32) {
    %c0_i32 = arith.constant 0 : i32
    %c0_i32_0 = arith.constant 0 : i32
    %c0_i32_1 = arith.constant 0 : i32
    return %arg0, %c0_i32, %c0_i32_0 : i32, i32, i32
  }
  func.func @transform_2(%arg0: i32) -> (i32, i32, i32) {
    %c0_i32 = arith.constant 0 : i32
    %c0_i32_0 = arith.constant 0 : i32
    %c0_i32_1 = arith.constant 0 : i32
    return %arg0, %c0_i32, %c0_i32_0 : i32, i32, i32
  }
  func.func @transform_3(%arg0: i32) -> (i32, i32) {
    %c0_i32 = arith.constant 0 : i32
    %c0_i32_0 = arith.constant 0 : i32
    %c0_i32_1 = arith.constant 0 : i32
    return %c0_i32, %c0_i32_0 : i32, i32
  }
  func.func @transform_4(%arg0: i32) -> (i32, i32) {
    %c0_i32 = arith.constant 0 : i32
    %c0_i32_0 = arith.constant 0 : i32
    %c0_i32_1 = arith.constant 0 : i32
    return %c0_i32, %c0_i32_0 : i32, i32
  }
  func.func @transform_5(%arg0: i32) -> (i32, i32) {
    %c0_i32 = arith.constant 0 : i32
    %c0_i32_0 = arith.constant 0 : i32
    %c0_i32_1 = arith.constant 0 : i32
    return %c0_i32, %c0_i32_0 : i32, i32
  }
  func.func @transform_6(%arg0: i32) -> (i32, i32) {
    %c0_i32 = arith.constant 0 : i32
    %c0_i32_0 = arith.constant 0 : i32
    %c0_i32_1 = arith.constant 0 : i32
    return %c0_i32, %c0_i32_0 : i32, i32
  }
  func.func @transform_7(%arg0: i32) -> (i32, i32) {
    %c0_i32 = arith.constant 0 : i32
    %c0_i32_0 = arith.constant 0 : i32
    return %arg0, %c0_i32 : i32, i32
  }
  func.func @transform_8(%arg0: i32) -> (i32, i32) {
    %c0_i32 = arith.constant 0 : i32
    %c0_i32_0 = arith.constant 0 : i32
    return %arg0, %c0_i32 : i32, i32
  }
}

</mosaic_0001>

<llo_original>
// kernel: tpu_custom_call.1
$region0: #{tpu_custom_call.1}
  #allocation0 [shape = 'u32[]', space=smem, size = 0x4, offset = 0x4, fixed_abs, tag = 'smem constant byte address 0x4 - core index']
  #allocation1 [shape = 'u32[144,128]{1,0:T(1,128)}', space=vmem, size = 0x12000, scoped, tag = 'internal scratch']
  %s0 = inlined_call_operand.hbm [shape: f32[16,32], index: 0, kind: input, shape index: {}]
  %s1 = inlined_call_operand.hbm [shape: f32[16,8,32], index: 1, kind: input, shape index: {}]
  %s2 = inlined_call_operand.hbm [shape: f32[16,8,32], index: 2, kind: input, shape index: {}]
  %s3 = inlined_call_operand.hbm [shape: f32[32,32], index: 3, kind: input, shape index: {}]
  %s4 = inlined_call_operand.hbm [shape: f32[32,32], index: 4, kind: input, shape index: {}]
  %s5 = inlined_call_operand.vmem [shape: f32[1,32], index: 5, kind: input, shape index: {}]
  %s6 = inlined_call_operand.vmem [shape: f32[1,32], index: 6, kind: input, shape index: {}]
  %s7 = inlined_call_operand.hbm [shape: f32[16,32], index: 7, kind: output, shape index: {0}]
  %s8 = inlined_call_operand.vmem [shape: f32[16,8], index: 8, kind: output, shape index: {1}]
  %9 = xla_tuple %s7, %s8
  %s10 = sld [smem:[#allocation0]]
  $region89: #{tpu_custom_call.1} parent=0
    _
  %s12 = ssub.s32 1, %s10
  %s13 = scalar_select 0, %s12, %s10
  $region1: #{tpu_custom_call.1} parent=0
    #allocation2 [shape = 'u8[8192]{0}', space=vmem, size = 0x2000, scoped, tag = 'input window, operand 0']
    #allocation3 [shape = 's32[2]{0}', space=sflag, size = 0x8, scoped, tag = 'scoped memory for tpu_custom_call.1']
    #allocation4 [shape = 's32[2]{0}', space=sflag, size = 0x8, scoped, tag = 'scoped memory for tpu_custom_call.1']
    #allocation5 [shape = 'u8[65536]{0}', space=vmem, size = 0x10000, scoped, tag = 'input window, operand 1']
    #allocation6 [shape = 's32[2]{0}', space=sflag, size = 0x8, scoped, tag = 'scoped memory for tpu_custom_call.1']
    #allocation7 [shape = 'u8[65536]{0}', space=vmem, size = 0x10000, scoped, tag = 'input window, operand 2']
    #allocation8 [shape = 'u8[16384]{0}', space=vmem, size = 0x4000, scoped, tag = 'input window, operand 3, single buffered']
    #allocation9 [shape = 's32[1]{0}', space=sflag, size = 0x4, scoped, tag = 'scoped memory for tpu_custom_call.1']
    #allocation10 [shape = 'u8[16384]{0}', space=vmem, size = 0x4000, scoped, tag = 'input window, operand 4, single buffered']
    #allocation11 [shape = 'u8[8192]{0}', space=vmem, size = 0x2000, scoped, tag = 'output window, operand 0']
    %14 = vsyncpa [#allocation3], 0
    %s15 = scalar_lea.sflag [#allocation3], 1
    %16 = vsyncpa %s15, 0
    %17 = vsyncpa [#allocation6], 0
    %s18 = scalar_lea.sflag [#allocation6], 1
    %19 = vsyncpa %s18, 0
    %20 = vsyncpa [#allocation9], 0
    %21 = vsyncpa [#allocation4], 0
    %s22 = scalar_lea.sflag [#allocation4], 1
    %23 = vsyncpa %s22, 0
    loop: start=0, step=1, limit=4
    $region2: #{tpu_custom_call.1} parent=1 // loop_pre_header
      _
    $region3: #{tpu_custom_call.1} parent=1 // loop_header
      %s25 = sphi 0, %s29
      %p26 = scmp.ge.s32.totalorder %s25, 4
      %s35 = sphi 0, %s37
      %s38 = sphi 0, %s35
      %s39 = sphi 0, %s38
      %s55 = sphi 0, %s39
      %s61 = sphi 0, %s63
      %s64 = sphi 0, %s61
      %s65 = sphi 0, %s64
      %s81 = sphi 0, %s65
      %s87 = sphi 0, %s89
      %s90 = sphi 0, %s87
      %s91 = sphi 0, %s90
      %s107 = sphi 0, %s91
      %s111 = sphi 0, %s111
      %s113 = sphi 0, %s111
      %s114 = sphi 0, %s113
      %s128 = sphi 0, %s114
      %s132 = sphi 0, %s132
      %s134 = sphi 0, %s132
      %s135 = sphi 0, %s134
      %s149 = sphi 0, %s135
      %s153 = sphi 0, %s153
      %s155 = sphi 0, %s153
      %s156 = sphi 0, %s155
      %s170 = sphi 0, %s156
      %s174 = sphi 0, %s174
      %s176 = sphi 0, %s174
      %s177 = sphi 0, %s176
      %s191 = sphi 0, %s177
      %s197 = sphi 0, %s199
      %s200 = sphi 0, %s197
      %s201 = sphi 0, %s200
      %s217 = sphi 0, %s201
      %s223 = sphi 0, %s225
      %s226 = sphi 0, %s223
      %s227 = sphi 0, %s226
      %s243 = sphi 0, %s227
    $region4: #{tpu_custom_call.1} parent=1 // loop_header_branch
      %28 = sbr.rel (%p26) target = $region8
    $region5: #{tpu_custom_call.1} parent=1 // loop_body
      %s30 = ssub.s32 %s25, 1
      %s31 = ssub.s32 %s25, 2
      %s32 = sadd.s32 %s25, 1
      %s33 = ssub.s32 %s25, %s32
      %p34 = scmp.eq.s32.totalorder %s33, 0
      %s36 = sadd.s32 %s35, 1
      %s37 = scalar_select %p34, %s35, %s36
      %p40 = pneg %p34
      %p41 = scmp.eq.s32.totalorder %s25, 1
      %p42 = por %p40, %p41
      %p43 = scmp.ne.s32.totalorder %s35, %s38
      %p44 = scmp.eq.s32.totalorder %s25, 0
      %p45 = por %p43, %p44
      %p46 = scmp.ne.s32.totalorder %s35, %s38
      %p47 = scmp.eq.s32.totalorder %s30, 1
      %p48 = por %p46, %p47
      %p49 = scmp.ne.s32.totalorder %s38, %s39
      %p50 = scmp.eq.s32.totalorder %s30, 0
      %p51 = por %p49, %p50
      %p52 = scmp.ne.s32.totalorder %s38, %s39
      %p53 = scmp.eq.s32.totalorder %s31, 1
      %p54 = por %p52, %p53
      %p56 = scmp.ne.s32.totalorder %s39, %s55
      %p57 = scmp.eq.s32.totalorder %s31, 0
      %p58 = por %p56, %p57
      %s59 = ssub.s32 %s25, %s32
      %p60 = scmp.eq.s32.totalorder %s59, 0
      %s62 = sadd.s32 %s61, 1
      %s63 = scalar_select %p60, %s61, %s62
      %p66 = pneg %p60
      %p67 = scmp.eq.s32.totalorder %s25, 1
      %p68 = por %p66, %p67
      %p69 = scmp.ne.s32.totalorder %s61, %s64
      %p70 = scmp.eq.s32.totalorder %s25, 0
      %p71 = por %p69, %p70
      %p72 = scmp.ne.s32.totalorder %s61, %s64
      %p73 = scmp.eq.s32.totalorder %s30, 1
      %p74 = por %p72, %p73
      %p75 = scmp.ne.s32.totalorder %s64, %s65
      %p76 = scmp.eq.s32.totalorder %s30, 0
      %p77 = por %p75, %p76
      %p78 = scmp.ne.s32.totalorder %s64, %s65
      %p79 = scmp.eq.s32.totalorder %s31, 1
      %p80 = por %p78, %p79
      %p82 = scmp.ne.s32.totalorder %s65, %s81
      %p83 = scmp.eq.s32.totalorder %s31, 0
      %p84 = por %p82, %p83
      %s85 = ssub.s32 %s25, %s32
      %p86 = scmp.eq.s32.totalorder %s85, 0
      %s88 = sadd.s32 %s87, 1
      %s89 = scalar_select %p86, %s87, %s88
      %p92 = pneg %p86
      %p93 = scmp.eq.s32.totalorder %s25, 1
      %p94 = por %p92, %p93
      %p95 = scmp.ne.s32.totalorder %s87, %s90
      %p96 = scmp.eq.s32.totalorder %s25, 0
      %p97 = por %p95, %p96
      %p98 = scmp.ne.s32.totalorder %s87, %s90
      %p99 = scmp.eq.s32.totalorder %s30, 1
      %p100 = por %p98, %p99
      %p101 = scmp.ne.s32.totalorder %s90, %s91
      %p102 = scmp.eq.s32.totalorder %s30, 0
      %p103 = por %p101, %p102
      %p104 = scmp.ne.s32.totalorder %s90, %s91
      %p105 = scmp.eq.s32.totalorder %s31, 1
      %p106 = por %p104, %p105
      %p108 = scmp.ne.s32.totalorder %s91, %s107
      %p109 = scmp.eq.s32.totalorder %s31, 0
      %p110 = por %p108, %p109
      %s112 = sadd.s32 %s111, 1
      %p115 = scmp.eq.s32.totalorder %s25, 1
      %p116 = scmp.ne.s32.totalorder %s111, %s113
      %p117 = scmp.eq.s32.totalorder %s25, 0
      %p118 = por %p116, %p117
      %p119 = scmp.ne.s32.totalorder %s111, %s113
      %p120 = scmp.eq.s32.totalorder %s30, 1
      %p121 = por %p119, %p120
      %p122 = scmp.ne.s32.totalorder %s113, %s114
      %p123 = scmp.eq.s32.totalorder %s30, 0
      %p124 = por %p122, %p123
      %p125 = scmp.ne.s32.totalorder %s113, %s114
      %p126 = scmp.eq.s32.totalorder %s31, 1
      %p127 = por %p125, %p126
      %p129 = scmp.ne.s32.totalorder %s114, %s128
      %p130 = scmp.eq.s32.totalorder %s31, 0
      %p131 = por %p129, %p130
      %s133 = sadd.s32 %s132, 1
      %p136 = scmp.eq.s32.totalorder %s25, 1
      %p137 = scmp.ne.s32.totalorder %s132, %s134
      %p138 = scmp.eq.s32.totalorder %s25, 0
      %p139 = por %p137, %p138
      %p140 = scmp.ne.s32.totalorder %s132, %s134
      %p141 = scmp.eq.s32.totalorder %s30, 1
      %p142 = por %p140, %p141
      %p143 = scmp.ne.s32.totalorder %s134, %s135
      %p144 = scmp.eq.s32.totalorder %s30, 0
      %p145 = por %p143, %p144
      %p146 = scmp.ne.s32.totalorder %s134, %s135
      %p147 = scmp.eq.s32.totalorder %s31, 1
      %p148 = por %p146, %p147
      %p150 = scmp.ne.s32.totalorder %s135, %s149
      %p151 = scmp.eq.s32.totalorder %s31, 0
      %p152 = por %p150, %p151
      %s154 = sadd.s32 %s153, 1
      %p157 = scmp.eq.s32.totalorder %s25, 1
      %p158 = scmp.ne.s32.totalorder %s153, %s155
      %p159 = scmp.eq.s32.totalorder %s25, 0
      %p160 = por %p158, %p159
      %p161 = scmp.ne.s32.totalorder %s153, %s155
      %p162 = scmp.eq.s32.totalorder %s30, 1
      %p163 = por %p161, %p162
      %p164 = scmp.ne.s32.totalorder %s155, %s156
      %p165 = scmp.eq.s32.totalorder %s30, 0
      %p166 = por %p164, %p165
      %p167 = scmp.ne.s32.totalorder %s155, %s156
      %p168 = scmp.eq.s32.totalorder %s31, 1
      %p169 = por %p167, %p168
      %p171 = scmp.ne.s32.totalorder %s156, %s170
      %p172 = scmp.eq.s32.totalorder %s31, 0
      %p173 = por %p171, %p172
      %s175 = sadd.s32 %s174, 1
      %p178 = scmp.eq.s32.totalorder %s25, 1
      %p179 = scmp.ne.s32.totalorder %s174, %s176
      %p180 = scmp.eq.s32.totalorder %s25, 0
      %p181 = por %p179, %p180
      %p182 = scmp.ne.s32.totalorder %s174, %s176
      %p183 = scmp.eq.s32.totalorder %s30, 1
      %p184 = por %p182, %p183
      %p185 = scmp.ne.s32.totalorder %s176, %s177
      %p186 = scmp.eq.s32.totalorder %s30, 0
      %p187 = por %p185, %p186
      %p188 = scmp.ne.s32.totalorder %s176, %s177
      %p189 = scmp.eq.s32.totalorder %s31, 1
      %p190 = por %p188, %p189
      %p192 = scmp.ne.s32.totalorder %s177, %s191
      %p193 = scmp.eq.s32.totalorder %s31, 0
      %p194 = por %p192, %p193
      %s195 = ssub.s32 %s25, %s32
      %p196 = scmp.eq.s32.totalorder %s195, 0
      %s198 = sadd.s32 %s197, 1
      %s199 = scalar_select %p196, %s197, %s198
      %p202 = pneg %p196
      %p203 = scmp.eq.s32.totalorder %s25, 1
      %p204 = por %p202, %p203
      %p205 = scmp.ne.s32.totalorder %s197, %s200
      %p206 = scmp.eq.s32.totalorder %s25, 0
      %p207 = por %p205, %p206
      %p208 = scmp.ne.s32.totalorder %s197, %s200
      %p209 = scmp.eq.s32.totalorder %s30, 1
      %p210 = por %p208, %p209
      %p211 = scmp.ne.s32.totalorder %s200, %s201
      %p212 = scmp.eq.s32.totalorder %s30, 0
      %p213 = por %p211, %p212
      %p214 = scmp.ne.s32.totalorder %s200, %s201
      %p215 = scmp.eq.s32.totalorder %s31, 1
      %p216 = por %p214, %p215
      %p218 = scmp.ne.s32.totalorder %s201, %s217
      %p219 = scmp.eq.s32.totalorder %s31, 0
      %p220 = por %p218, %p219
      %s221 = ssub.s32 %s25, %s32
      %p222 = scmp.eq.s32.totalorder %s221, 0
      %s224 = sadd.s32 %s223, 1
      %s225 = scalar_select %p222, %s223, %s224
      %p228 = pneg %p222
      %p229 = scmp.eq.s32.totalorder %s25, 1
      %p230 = por %p228, %p229
      %p231 = scmp.ne.s32.totalorder %s223, %s226
      %p232 = scmp.eq.s32.totalorder %s25, 0
      %p233 = por %p231, %p232
      %p234 = scmp.ne.s32.totalorder %s223, %s226
      %p235 = scmp.eq.s32.totalorder %s30, 1
      %p236 = por %p234, %p235
      %p237 = scmp.ne.s32.totalorder %s226, %s227
      %p238 = scmp.eq.s32.totalorder %s30, 0
      %p239 = por %p237, %p238
      %p240 = scmp.ne.s32.totalorder %s226, %s227
      %p241 = scmp.eq.s32.totalorder %s31, 1
      %p242 = por %p240, %p241
      %p244 = scmp.ne.s32.totalorder %s227, %s243
      %p245 = scmp.eq.s32.totalorder %s31, 0
      %p246 = por %p244, %p245
      %p247 = scmp.le.s32.totalorder 1, %s25
      %p248 = scmp.lt.s32.totalorder %s25, 3
      %p249 = pnand %p247, %p248
      %p250 = pneg %p249
      // Predicated region
      $region9: #{tpu_custom_call.1} parent=5 // pred_check
        _
      $region10: #{tpu_custom_call.1} parent=5 // pred_check_branch
        %252 = sbr.rel (%p249) target = $region12
      $region11: #{tpu_custom_call.1} parent=5 // pred_region
        %s253 = ssub.s32 %s25, 1
        // Predicated region
        $region13: #{tpu_custom_call.1} parent=11 // pred_check
          %p254 = pneg %p124
        $region14: #{tpu_custom_call.1} parent=11 // pred_check_branch
          %256 = sbr.rel (%p254) target = $region16
        $region15: #{tpu_custom_call.1} parent=11 // pred_region
          %s258 = ssub.s32 512, 512
          %259 = vsyncadd [#allocation9], %s258
          %s260 = sshll.u32 [#allocation8], 4
          %s261 = int_to_ptr.vmem [resolvable:$true] %s260
          %266 = dma.hbm_to_vmem [thread:$0]  %s3, 512, %s261, [#allocation9], 128, 128, 8
        $region16: #{tpu_custom_call.1} parent=11 // pred_fallthru
          _
        // Predicated region
        $region17: #{tpu_custom_call.1} parent=11 // pred_check
          %p267 = pneg %p145
        $region18: #{tpu_custom_call.1} parent=11 // pred_check_branch
          %269 = sbr.rel (%p267) target = $region20
        $region19: #{tpu_custom_call.1} parent=11 // pred_region
          %s271 = ssub.s32 512, 512
          %272 = vsyncadd [#allocation9], %s271
          %s273 = sshll.u32 [#allocation10], 4
          %s274 = int_to_ptr.vmem [resolvable:$true] %s273
          %279 = dma.hbm_to_vmem [thread:$0]  %s4, 512, %s274, [#allocation9], 128, 128, 8
        $region20: #{tpu_custom_call.1} parent=11 // pred_fallthru
          _
        // Predicated region
        $region21: #{tpu_custom_call.1} parent=11 // pred_check
          %p280 = pneg %p166
        $region22: #{tpu_custom_call.1} parent=11 // pred_check_branch
          %282 = sbr.rel (%p280) target = $region24
        $region23: #{tpu_custom_call.1} parent=11 // pred_region
          _
        $region24: #{tpu_custom_call.1} parent=11 // pred_fallthru
          _
        // Predicated region
        $region25: #{tpu_custom_call.1} parent=11 // pred_check
          %p283 = pneg %p187
        $region26: #{tpu_custom_call.1} parent=11 // pred_check_branch
          %285 = sbr.rel (%p283) target = $region28
        $region27: #{tpu_custom_call.1} parent=11 // pred_region
          _
        $region28: #{tpu_custom_call.1} parent=11 // pred_fallthru
          _
      $region12: #{tpu_custom_call.1} parent=5 // pred_fallthru
        _
      %p286 = scmp.lt.s32.totalorder %s25, 2
      // Predicated region
      $region29: #{tpu_custom_call.1} parent=5 // pred_check
        %p287 = pneg %p286
      $region30: #{tpu_custom_call.1} parent=5 // pred_check_branch
        %289 = sbr.rel (%p287) target = $region32
      $region31: #{tpu_custom_call.1} parent=5 // pred_region
        // Predicated region
        $region33: #{tpu_custom_call.1} parent=31 // pred_check
          %p290 = pneg %p45
        $region34: #{tpu_custom_call.1} parent=31 // pred_check_branch
          %292 = sbr.rel (%p290) target = $region36
        $region35: #{tpu_custom_call.1} parent=31 // pred_region
          %s293 = sand.u32 %s35, 1
          %s294 = scalar_lea.sflag [#allocation3], %s293
          %s295 = sand.u32 %s35, 1
          %s296 = smul.addr %s295, 8
          %s297 = scalar_lea.vmem [#allocation2], %s296
          %s299 = ssub.s32 128, 128
          %300 = vsyncadd %s294, %s299
          %s301 = smul.addr %s25, 128
          %s302 = scalar_lea.hbm %s0, %s301
          %s304 = sshll.u32 %s297, 4
          %s305 = int_to_ptr.vmem [resolvable:$true] %s304
          %307 = dma.hbm_to_vmem [thread:$0]  %s302, 128, %s305, %s294
        $region36: #{tpu_custom_call.1} parent=31 // pred_fallthru
          _
        // Predicated region
        $region37: #{tpu_custom_call.1} parent=31 // pred_check
          %p308 = pneg %p71
        $region38: #{tpu_custom_call.1} parent=31 // pred_check_branch
          %310 = sbr.rel (%p308) target = $region40
        $region39: #{tpu_custom_call.1} parent=31 // pred_region
          %s311 = sand.u32 %s25, 1
          %s312 = scalar_lea.sflag [#allocation6], %s311
          %s313 = sand.u32 %s61, 1
          %s314 = smul.addr %s313, 64
          %s315 = scalar_lea.vmem [#allocation5], %s314
          %s316 = smul.u32 8, %s25
          %s318 = ssub.s32 1024, 1024
          %319 = vsyncadd %s312, %s318
          %s320 = smul.addr %s316, 128
          %s321 = scalar_lea.hbm %s1, %s320
          %s322 = sshll.u32 %s315, 4
          %s323 = int_to_ptr.vmem [resolvable:$true] %s322
          %328 = dma.hbm_to_vmem [thread:$0]  %s321, 1024, %s323, %s312, 128, 128, 8
        $region40: #{tpu_custom_call.1} parent=31 // pred_fallthru
          _
        // Predicated region
        $region41: #{tpu_custom_call.1} parent=31 // pred_check
          %p329 = pneg %p97
        $region42: #{tpu_custom_call.1} parent=31 // pred_check_branch
          %331 = sbr.rel (%p329) target = $region44
        $region43: #{tpu_custom_call.1} parent=31 // pred_region
          %s332 = sand.u32 %s25, 1
          %s333 = scalar_lea.sflag [#allocation6], %s332
          %s334 = sand.u32 %s87, 1
          %s335 = smul.addr %s334, 64
          %s336 = scalar_lea.vmem [#allocation7], %s335
          %s337 = smul.u32 8, %s25
          %s339 = ssub.s32 1024, 1024
          %340 = vsyncadd %s333, %s339
          %s341 = smul.addr %s337, 128
          %s342 = scalar_lea.hbm %s2, %s341
          %s343 = sshll.u32 %s336, 4
          %s344 = int_to_ptr.vmem [resolvable:$true] %s343
          %349 = dma.hbm_to_vmem [thread:$0]  %s342, 1024, %s344, %s333, 128, 128, 8
        $region44: #{tpu_custom_call.1} parent=31 // pred_fallthru
          _
      $region32: #{tpu_custom_call.1} parent=5 // pred_fallthru
        _
      %p350 = scmp.le.s32.totalorder 1, %s25
      %p351 = scmp.lt.s32.totalorder %s25, 3
      %p352 = pnand %p350, %p351
      %p353 = pneg %p352
      // Predicated region
      $region45: #{tpu_custom_call.1} parent=5 // pred_check
        _
      $region46: #{tpu_custom_call.1} parent=5 // pred_check_branch
        %355 = sbr.rel (%p352) target = $region48
      $region47: #{tpu_custom_call.1} parent=5 // pred_region
        %s356 = ssub.s32 %s25, 1
        %s357 = sand.u32 %s38, 1
        %s358 = scalar_lea.sflag [#allocation3], %s357
        %s359 = sand.u32 %s38, 1
        %s360 = smul.addr %s359, 8
        %s361 = scalar_lea.vmem [#allocation2], %s360
        // Predicated region
        $region49: #{tpu_custom_call.1} parent=47 // pred_check
          %p362 = pneg %p51
        $region50: #{tpu_custom_call.1} parent=47 // pred_check_branch
          %364 = sbr.rel (%p362) target = $region52
        $region51: #{tpu_custom_call.1} parent=47 // pred_region
          %365 = dma.done %s358, 128
        $region52: #{tpu_custom_call.1} parent=47 // pred_fallthru
          _
        %s366 = sand.u32 %s30, 1
        %s367 = scalar_lea.sflag [#allocation6], %s366
        %s368 = sand.u32 %s64, 1
        %s369 = smul.addr %s368, 64
        %s370 = scalar_lea.vmem [#allocation5], %s369
        // Predicated region
        $region53: #{tpu_custom_call.1} parent=47 // pred_check
          %p371 = pneg %p77
        $region54: #{tpu_custom_call.1} parent=47 // pred_check_branch
          %373 = sbr.rel (%p371) target = $region56
        $region55: #{tpu_custom_call.1} parent=47 // pred_region
          %374 = dma.done %s367, 1024
        $region56: #{tpu_custom_call.1} parent=47 // pred_fallthru
          _
        %s375 = sand.u32 %s30, 1
        %s376 = scalar_lea.sflag [#allocation6], %s375
        %s377 = sand.u32 %s90, 1
        %s378 = smul.addr %s377, 64
        %s379 = scalar_lea.vmem [#allocation7], %s378
        // Predicated region
        $region57: #{tpu_custom_call.1} parent=47 // pred_check
          %p380 = pneg %p103
        $region58: #{tpu_custom_call.1} parent=47 // pred_check_branch
          %382 = sbr.rel (%p380) target = $region60
        $region59: #{tpu_custom_call.1} parent=47 // pred_region
          %383 = dma.done %s376, 1024
        $region60: #{tpu_custom_call.1} parent=47 // pred_fallthru
          _
        // Predicated region
        $region61: #{tpu_custom_call.1} parent=47 // pred_check
          %p384 = pneg %p124
        $region62: #{tpu_custom_call.1} parent=47 // pred_check_branch
          %386 = sbr.rel (%p384) target = $region64
        $region63: #{tpu_custom_call.1} parent=47 // pred_region
          %387 = dma.done [#allocation9], 512
        $region64: #{tpu_custom_call.1} parent=47 // pred_fallthru
          _
        // Predicated region
        $region65: #{tpu_custom_call.1} parent=47 // pred_check
          %p388 = pneg %p145
        $region66: #{tpu_custom_call.1} parent=47 // pred_check_branch
          %390 = sbr.rel (%p388) target = $region68
        $region67: #{tpu_custom_call.1} parent=47 // pred_region
          %391 = dma.done [#allocation9], 512
        $region68: #{tpu_custom_call.1} parent=47 // pred_fallthru
          _
        %s392 = sand.u32 %s38, 1
        %s393 = scalar_lea.sflag [#allocation3], %s392
        %s394 = sand.u32 %s38, 1
        %s395 = smul.addr %s394, 8
        %s396 = scalar_lea.vmem [#allocation2], %s395
        %p397 = pneg %p51
        %p398 = pneg %p48
        %s399 = sand.u32 %s30, 1
        %s400 = scalar_lea.sflag [#allocation6], %s399
        %s401 = sand.u32 %s64, 1
        %s402 = smul.addr %s401, 64
        %s403 = scalar_lea.vmem [#allocation5], %s402
        %p404 = pneg %p77
        %p405 = pneg %p74
        %s406 = sand.u32 %s30, 1
        %s407 = scalar_lea.sflag [#allocation6], %s406
        %s408 = sand.u32 %s90, 1
        %s409 = smul.addr %s408, 64
        %s410 = scalar_lea.vmem [#allocation7], %s409
        %p411 = pneg %p103
        %p412 = pneg %p100
        %p413 = pneg %p124
        %p414 = pneg %p121
        %p415 = pneg %p145
        %p416 = pneg %p142
        %p417 = pneg %p166
        %p418 = pneg %p163
        %p419 = pneg %p187
        %p420 = pneg %p184
        %p421 = pneg %p213
        %p422 = pneg %p210
        %s423 = sand.u32 %s200, 1
        %s424 = scalar_lea.sflag [#allocation4], %s423
        %s425 = sand.u32 %s200, 1
        %s426 = smul.addr %s425, 8
        %s427 = scalar_lea.vmem [#allocation11], %s426
        %p428 = pneg %p239
        %p429 = pneg %p236
        %p430 = scmp.lt.s32.totalorder %s30, 1
        %s431 = scalar_select %p430, %s30, 1
        %s432 = smul.addr %s431, 8
        %s433 = scalar_lea.vmem %s8, %s432
        %s434 = smul.u32 8, %s30
        %s435 = smul.u32 8, %s30
        %p436 = scmp.lt.s32.totalorder %s30, 1
        %s437 = scalar_select %p436, %s30, 1
        %s438 = smul.addr %s437, 8
        %s439 = scalar_lea.vmem %s8, %s438
        %v440 = vld [vmem:[%s361] sm:$0xff]
        %v441 = vld [vmem:[%s370] sm:$0xff]
        %v442 = vld [vmem:[%s370 + $0x8] sm:$0xff]
        %v443 = vld [vmem:[%s370 + $0x10] sm:$0xff]
        %v444 = vld [vmem:[%s370 + $0x18] sm:$0xff]
        %v445 = vld [vmem:[%s370 + $0x20] sm:$0xff]
        %v446 = vld [vmem:[%s370 + $0x28] sm:$0xff]
        %v447 = vld [vmem:[%s370 + $0x30] sm:$0xff]
        %v448 = vld [vmem:[%s370 + $0x38] sm:$0xff]
        %v449 = vld [vmem:[%s379] sm:$0xff]
        %v450 = vld [vmem:[%s379 + $0x8] sm:$0xff]
        %v451 = vld [vmem:[%s379 + $0x10] sm:$0xff]
        %v452 = vld [vmem:[%s379 + $0x18] sm:$0xff]
        %v453 = vld [vmem:[%s379 + $0x20] sm:$0xff]
        %v454 = vld [vmem:[%s379 + $0x28] sm:$0xff]
        %v455 = vld [vmem:[%s379 + $0x30] sm:$0xff]
        %v456 = vld [vmem:[%s379 + $0x38] sm:$0xff]
        %v457 = vld [vmem:[#allocation8] sm:$0xff]
        %v458 = vld [vmem:[#allocation8 + $0x8] sm:$0xff]
        %v459 = vld [vmem:[#allocation8 + $0x10] sm:$0xff]
        %v460 = vld [vmem:[#allocation8 + $0x18] sm:$0xff]
        %v461 = vld [vmem:[#allocation10] sm:$0xff]
        %v462 = vld [vmem:[#allocation10 + $0x8] sm:$0xff]
        %v463 = vld [vmem:[#allocation10 + $0x10] sm:$0xff]
        %v464 = vld [vmem:[#allocation10 + $0x18] sm:$0xff]
        %v465 = vld [vmem:[%s5] sm:$0x1]
        %v466 = vld [vmem:[%s6] sm:$0x1]
        %vm467 = vcmask 261120
        %v469 = vsel %vm467, %v441, 0
        %v472 = vsel %vm467, %v442, 0
        %v475 = vsel %vm467, %v443, 0
        %v478 = vsel %vm467, %v444, 0
        %v481 = vsel %vm467, %v445, 0
        %v484 = vsel %vm467, %v446, 0
        %v487 = vsel %vm467, %v447, 0
        %v490 = vsel %vm467, %v448, 0
        %492 = vmatprep.subr.mxu0 0.0
        %493 = vmatpush1.msra.mxu0 %v461
        %494 = vmatprep.subr.mxu0 0.0
        %495 = vmatpush1.msra.mxu0 %v462
        %496 = vmatprep.subr.mxu0 0.0
        %497 = vmatpush1.msra.mxu0 %v463
        %498 = vmatprep.subr.mxu0 0.0
        %499 = vmatpush1.msra.mxu0 %v464
        %500 = vmatprep.subr.mxu0 0.0
        %501 = vmatpush1.msra.mxu0 0.0
        %502 = vmatprep.subr.mxu0 0.0
        %503 = vmatpush1.msra.mxu0 0.0
        %504 = vmatprep.subr.mxu0 0.0
        %505 = vmatpush1.msra.mxu0 0.0
        %506 = vmatprep.subr.mxu0 0.0
        %507 = vmatpush1.msra.mxu0 0.0
        %508 = vmatprep.subr.mxu0 0.0
        %509 = vmatpush1.msra.mxu0 0.0
        %510 = vmatprep.subr.mxu0 0.0
        %511 = vmatpush1.msra.mxu0 0.0
        %512 = vmatprep.subr.mxu0 0.0
        %513 = vmatpush1.msra.mxu0 0.0
        %514 = vmatprep.subr.mxu0 0.0
        %515 = vmatpush1.msra.mxu0 0.0
        %516 = vmatprep.subr.mxu0 0.0
        %517 = vmatpush1.msra.mxu0 0.0
        %518 = vmatprep.subr.mxu0 0.0
        %519 = vmatpush1.msra.mxu0 0.0
        %520 = vmatprep.subr.mxu0 0.0
        %521 = vmatpush1.msra.mxu0 0.0
        %522 = vmatprep.subr.mxu0 0.0
        %523 = vmatpush1.msra.mxu0 0.0
        %524 = vmatprep.subr.mxu0 0.0
        %525 = vmatpush1.msra.mxu0 0.0
        %526 = vmatprep.subr.mxu0 0.0
        %527 = vmatpush1.msra.mxu0 0.0
        %528 = vmatprep.subr.mxu0 0.0
        %529 = vmatpush1.msra.mxu0 0.0
        %530 = vmatprep.subr.mxu0 0.0
        %531 = vmatpush1.msra.mxu0 0.0
        %532 = vmatprep.subr.mxu0 0.0
        %533 = vmatpush1.msra.mxu0 0.0
        %534 = vmatprep.subr.mxu0 0.0
        %535 = vmatpush1.msra.mxu0 0.0
        %536 = vmatprep.subr.mxu0 0.0
        %537 = vmatpush1.msra.mxu0 0.0
        %538 = vmatprep.subr.mxu0 0.0
        %539 = vmatpush1.msra.mxu0 0.0
        %540 = vmatprep.subr.mxu0 0.0
        %541 = vmatpush1.msra.mxu0 0.0
        %542 = vmatprep.subr.mxu0 0.0
        %543 = vmatpush1.msra.mxu0 0.0
        %544 = vmatprep.subr.mxu0 0.0
        %545 = vmatpush1.msra.mxu0 0.0
        %546 = vmatprep.subr.mxu0 0.0
        %547 = vmatpush1.msra.mxu0 0.0
        %548 = vmatprep.subr.mxu0 0.0
        %549 = vmatpush1.msra.mxu0 0.0
        %550 = vmatprep.subr.mxu0 0.0
        %551 = vmatpush1.msra.mxu0 0.0
        %552 = vmatprep.subr.mxu0 0.0
        %553 = vmatpush1.msra.mxu0 0.0
        %554 = vmatprep.subr.mxu0 0.0
        %555 = vmatpush1.msra.mxu0 0.0
        %556 = vmatprep.mubr.f32.mxu0 0.0
        %557 = vmatmul.mubr.f32.gmra.mrb[0].mxu0 %v469
        %v558 = vpop.f32.mrb[0].mxu0
        %v559 = vadd.f32 0.0, %v558
        %v560 = vpop.f32.mrb[0].mxu0
        %561 = vmatprep.mubr.f32.mxu0 0.0
        %562 = vmatmul.mubr.f32.gmra.mrb[0].mxu0 %v472
        %v563 = vpop.f32.mrb[0].mxu0
        %v564 = vadd.f32 0.0, %v563
        %v565 = vpop.f32.mrb[0].mxu0
        %566 = vmatprep.mubr.f32.mxu0 0.0
        %567 = vmatmul.mubr.f32.gmra.mrb[0].mxu0 %v475
        %v568 = vpop.f32.mrb[0].mxu0
        %v569 = vadd.f32 0.0, %v568
        %v570 = vpop.f32.mrb[0].mxu0
        %571 = vmatprep.mubr.f32.mxu0 0.0
        %572 = vmatmul.mubr.f32.gmra.mrb[0].mxu0 %v478
        %v573 = vpop.f32.mrb[0].mxu0
        %v574 = vadd.f32 0.0, %v573
        %v575 = vpop.f32.mrb[0].mxu0
        %576 = vmatprep.mubr.f32.mxu0 0.0
        %577 = vmatmul.mubr.f32.gmra.mrb[0].mxu0 %v481
        %v578 = vpop.f32.mrb[0].mxu0
        %v579 = vadd.f32 0.0, %v578
        %v580 = vpop.f32.mrb[0].mxu0
        %581 = vmatprep.mubr.f32.mxu0 0.0
        %582 = vmatmul.mubr.f32.gmra.mrb[0].mxu0 %v484
        %v583 = vpop.f32.mrb[0].mxu0
        %v584 = vadd.f32 0.0, %v583
        %v585 = vpop.f32.mrb[0].mxu0
        %586 = vmatprep.mubr.f32.mxu0 0.0
        %587 = vmatmul.mubr.f32.gmra.mrb[0].mxu0 %v487
        %v588 = vpop.f32.mrb[0].mxu0
        %v589 = vadd.f32 0.0, %v588
        %v590 = vpop.f32.mrb[0].mxu0
        %591 = vmatprep.mubr.f32.mxu0 0.0
        %592 = vmatmul.mubr.f32.gmra.mrb[0].mxu0 %v490
        %v593 = vpop.f32.mrb[0].mxu0
        %v594 = vadd.f32 0.0, %v593
        %v595 = vpop.f32.mrb[0].mxu0
        %596 = vdwg.mxu0
        %v598 = vsel %vm467, %v440, 0
        %600 = vmatprep.subr.mxu0 0.0
        %601 = vmatpush1.msra.mxu0 %v457
        %602 = vmatprep.subr.mxu0 0.0
        %603 = vmatpush1.msra.mxu0 %v458
        %604 = vmatprep.subr.mxu0 0.0
        %605 = vmatpush1.msra.mxu0 %v459
        %606 = vmatprep.subr.mxu0 0.0
        %607 = vmatpush1.msra.mxu0 %v460
        %608 = vmatprep.subr.mxu0 0.0
        %609 = vmatpush1.msra.mxu0 0.0
        %610 = vmatprep.subr.mxu0 0.0
        %611 = vmatpush1.msra.mxu0 0.0
        %612 = vmatprep.subr.mxu0 0.0
        %613 = vmatpush1.msra.mxu0 0.0
        %614 = vmatprep.subr.mxu0 0.0
        %615 = vmatpush1.msra.mxu0 0.0
        %616 = vmatprep.subr.mxu0 0.0
        %617 = vmatpush1.msra.mxu0 0.0
        %618 = vmatprep.subr.mxu0 0.0
        %619 = vmatpush1.msra.mxu0 0.0
        %620 = vmatprep.subr.mxu0 0.0
        %621 = vmatpush1.msra.mxu0 0.0
        %622 = vmatprep.subr.mxu0 0.0
        %623 = vmatpush1.msra.mxu0 0.0
        %624 = vmatprep.subr.mxu0 0.0
        %625 = vmatpush1.msra.mxu0 0.0
        %626 = vmatprep.subr.mxu0 0.0
        %627 = vmatpush1.msra.mxu0 0.0
        %628 = vmatprep.subr.mxu0 0.0
        %629 = vmatpush1.msra.mxu0 0.0
        %630 = vmatprep.subr.mxu0 0.0
        %631 = vmatpush1.msra.mxu0 0.0
        %632 = vmatprep.subr.mxu0 0.0
        %633 = vmatpush1.msra.mxu0 0.0
        %634 = vmatprep.subr.mxu0 0.0
        %635 = vmatpush1.msra.mxu0 0.0
        %636 = vmatprep.subr.mxu0 0.0
        %637 = vmatpush1.msra.mxu0 0.0
        %638 = vmatprep.subr.mxu0 0.0
        %639 = vmatpush1.msra.mxu0 0.0
        %640 = vmatprep.subr.mxu0 0.0
        %641 = vmatpush1.msra.mxu0 0.0
        %642 = vmatprep.subr.mxu0 0.0
        %643 = vmatpush1.msra.mxu0 0.0
        %644 = vmatprep.subr.mxu0 0.0
        %645 = vmatpush1.msra.mxu0 0.0
        %646 = vmatprep.subr.mxu0 0.0
        %647 = vmatpush1.msra.mxu0 0.0
        %648 = vmatprep.subr.mxu0 0.0
        %649 = vmatpush1.msra.mxu0 0.0
        %650 = vmatprep.subr.mxu0 0.0
        %651 = vmatpush1.msra.mxu0 0.0
        %652 = vmatprep.subr.mxu0 0.0
        %653 = vmatpush1.msra.mxu0 0.0
        %654 = vmatprep.subr.mxu0 0.0
        %655 = vmatpush1.msra.mxu0 0.0
        %656 = vmatprep.subr.mxu0 0.0
        %657 = vmatpush1.msra.mxu0 0.0
        %658 = vmatprep.subr.mxu0 0.0
        %659 = vmatpush1.msra.mxu0 0.0
        %660 = vmatprep.subr.mxu0 0.0
        %661 = vmatpush1.msra.mxu0 0.0
        %662 = vmatprep.subr.mxu0 0.0
        %663 = vmatpush1.msra.mxu0 0.0
        %664 = vmatprep.mubr.f32.mxu0 0.0
        %665 = vmatmul.mubr.f32.gmra.mrb[0].mxu0 %v598
        %v666 = vpop.f32.mrb[0].mxu0
        %v667 = vadd.f32 0.0, %v666
        %v668 = vpop.f32.mrb[0].mxu0
        %669 = vdwg.mxu0
        %v671 = vcombine.high %v667, %v667
        %v673 = vunpack.c.l.s4 1966171168
        %v674 = vunpack.c.0.s8 %v673
        %v675 = vlaneseq
        %v676 = vshrl.u32 %v675, 7
        %v677 = vsub.s32 %v674, %v676
        %v678 = vrot.slane %v667, %v677
        %v680 = vunpack.c.l.s4 1966171168
        %v681 = vunpack.c.0.s8 %v680
        %v682 = vlaneseq
        %v683 = vshrl.u32 %v682, 7
        %v684 = vsub.s32 %v681, %v683
        %v685 = vrot.slane %v671, %v684
        %v686 = vcombine.high %v678, %v678
        %v687 = vcombine.high %v685, %v685
        %v689 = vunpack.c.l.s4 1966171168
        %v690 = vunpack.c.0.s8 %v689
        %v691 = vlaneseq
        %v692 = vshrl.u32 %v691, 7
        %v693 = vsub.s32 %v690, %v692
        %v694 = vrot.slane %v678, %v693
        %v696 = vunpack.c.l.s4 1966171168
        %v697 = vunpack.c.0.s8 %v696
        %v698 = vlaneseq
        %v699 = vshrl.u32 %v698, 7
        %v700 = vsub.s32 %v697, %v699
        %v701 = vrot.slane %v685, %v700
        %v703 = vunpack.c.l.s4 1966171168
        %v704 = vunpack.c.0.s8 %v703
        %v705 = vlaneseq
        %v706 = vshrl.u32 %v705, 7
        %v707 = vsub.s32 %v704, %v706
        %v708 = vrot.slane %v686, %v707
        %v710 = vunpack.c.l.s4 1966171168
        %v711 = vunpack.c.0.s8 %v710
        %v712 = vlaneseq
        %v713 = vshrl.u32 %v712, 7
        %v714 = vsub.s32 %v711, %v713
        %v715 = vrot.slane %v687, %v714
        %v716 = vcombine.high %v694, %v694
        %v717 = vcombine.high %v701, %v701
        %v718 = vcombine.high %v708, %v708
        %v719 = vcombine.high %v715, %v715
        %v720 = vlaneseq
        %v721 = vshrl.u32 %v720, 7
        %v722 = vsub.s32 0, %v721
        %v723 = vrot.slane %v694, %v722
        %v724 = vlaneseq
        %v725 = vshrl.u32 %v724, 7
        %v726 = vsub.s32 0, %v725
        %v727 = vrot.slane %v708, %v726
        %v728 = vlaneseq
        %v729 = vshrl.u32 %v728, 7
        %v730 = vsub.s32 0, %v729
        %v731 = vrot.slane %v716, %v730
        %v732 = vlaneseq
        %v733 = vshrl.u32 %v732, 7
        %v734 = vsub.s32 0, %v733
        %v735 = vrot.slane %v718, %v734
        %v736 = vlaneseq
        %v737 = vshrl.u32 %v736, 7
        %v738 = vsub.s32 0, %v737
        %v739 = vrot.slane %v701, %v738
        %v740 = vlaneseq
        %v741 = vshrl.u32 %v740, 7
        %v742 = vsub.s32 0, %v741
        %v743 = vrot.slane %v715, %v742
        %v744 = vlaneseq
        %v745 = vshrl.u32 %v744, 7
        %v746 = vsub.s32 0, %v745
        %v747 = vrot.slane %v717, %v746
        %v748 = vlaneseq
        %v749 = vshrl.u32 %v748, 7
        %v750 = vsub.s32 0, %v749
        %v751 = vrot.slane %v719, %v750
        %v760 = vadd.f32 %v559, %v723
        %v761 = vadd.f32 %v564, %v727
        %v762 = vadd.f32 %v569, %v731
        %v763 = vadd.f32 %v574, %v735
        %v764 = vadd.f32 %v579, %v739
        %v765 = vadd.f32 %v584, %v743
        %v766 = vadd.f32 %v589, %v747
        %v767 = vadd.f32 %v594, %v751
        %v769 = vlaneseq
        %v770 = vshrl.u32 %v769, 7
        %v771 = vsub.s32 0, %v770
        %v772 = vrot.slane %v465, %v771
        %v774 = vadd.f32 %v760, %v772
        %v775 = vadd.f32 %v761, %v772
        %v776 = vadd.f32 %v762, %v772
        %v777 = vadd.f32 %v763, %v772
        %v778 = vadd.f32 %v764, %v772
        %v779 = vadd.f32 %v765, %v772
        %v780 = vadd.f32 %v766, %v772
        %v781 = vadd.f32 %v767, %v772
        %v782 = vmax.f32 %v774, 0.0
        %v783 = vmax.f32 %v775, 0.0
        %v784 = vmax.f32 %v776, 0.0
        %v785 = vmax.f32 %v777, 0.0
        %v786 = vmax.f32 %v778, 0.0
        %v787 = vmax.f32 %v779, 0.0
        %v788 = vmax.f32 %v780, 0.0
        %v789 = vmax.f32 %v781, 0.0
        %v791 = vlaneseq
        %v792 = vshrl.u32 %v791, 7
        %v793 = vsub.s32 0, %v792
        %v794 = vrot.slane %v466, %v793
        %v796 = vmul.f32 %v782, %v794
        %v797 = vmul.f32 %v783, %v794
        %v798 = vmul.f32 %v784, %v794
        %v799 = vmul.f32 %v785, %v794
        %v800 = vmul.f32 %v786, %v794
        %v801 = vmul.f32 %v787, %v794
        %v802 = vmul.f32 %v788, %v794
        %v803 = vmul.f32 %v789, %v794
        %v804 = vsel %vm467, %v796, 0.0
        %805 = vadd.xlane.f32.xlu0 %v804
        %v806 = vpop.xlane.xlu0 %805
        %v807 = vsel %vm467, %v797, 0.0
        %808 = vadd.xlane.f32.xlu0 %v807
        %v809 = vpop.xlane.xlu0 %808
        %v810 = vsel %vm467, %v798, 0.0
        %811 = vadd.xlane.f32.xlu0 %v810
        %v812 = vpop.xlane.xlu0 %811
        %v813 = vsel %vm467, %v799, 0.0
        %814 = vadd.xlane.f32.xlu0 %v813
        %v815 = vpop.xlane.xlu0 %814
        %v816 = vsel %vm467, %v800, 0.0
        %817 = vadd.xlane.f32.xlu0 %v816
        %v818 = vpop.xlane.xlu0 %817
        %v819 = vsel %vm467, %v801, 0.0
        %820 = vadd.xlane.f32.xlu0 %v819
        %v821 = vpop.xlane.xlu0 %820
        %v822 = vsel %vm467, %v802, 0.0
        %823 = vadd.xlane.f32.xlu0 %v822
        %v824 = vpop.xlane.xlu0 %823
        %v825 = vsel %vm467, %v803, 0.0
        %826 = vadd.xlane.f32.xlu0 %v825
        %v827 = vpop.xlane.xlu0 %826
        %v836 = vlaneseq
        %v837 = vand.u32 %v836, 127
        %v838 = vlaneseq
        %v839 = vshrl.u32 %v838, 7
        %v840 = vsub.s32 %v837, %v839
        %v841 = vrot.slane %v806, %v840
        %v842 = vlaneseq
        %v843 = vshrl.u32 %v842, 7
        %v844 = vsub.s32 %v837, %v843
        %v845 = vrot.slane %v809, %v844
        %v846 = vlaneseq
        %v847 = vshrl.u32 %v846, 7
        %v848 = vsub.s32 %v837, %v847
        %v849 = vrot.slane %v812, %v848
        %v850 = vlaneseq
        %v851 = vshrl.u32 %v850, 7
        %v852 = vsub.s32 %v837, %v851
        %v853 = vrot.slane %v815, %v852
        %v854 = vlaneseq
        %v855 = vshrl.u32 %v854, 7
        %v856 = vsub.s32 %v837, %v855
        %v857 = vrot.slane %v818, %v856
        %v858 = vlaneseq
        %v859 = vshrl.u32 %v858, 7
        %v860 = vsub.s32 %v837, %v859
        %v861 = vrot.slane %v821, %v860
        %v862 = vlaneseq
        %v863 = vshrl.u32 %v862, 7
        %v864 = vsub.s32 %v837, %v863
        %v865 = vrot.slane %v824, %v864
        %v866 = vlaneseq
        %v867 = vshrl.u32 %v866, 7
        %v868 = vsub.s32 %v837, %v867
        %v869 = vrot.slane %v827, %v868
        %vm870 = vcmask 1041409
        %v871 = vsel %vm870, %v845, %v841
        %vm872 = vcmask 1042434
        %v873 = vsel %vm872, %v849, %v871
        %vm874 = vcmask 1043459
        %v875 = vsel %vm874, %v853, %v873
        %vm876 = vcmask 1044484
        %v877 = vsel %vm876, %v857, %v875
        %vm878 = vcmask 1045509
        %v879 = vsel %vm878, %v861, %v877
        %vm880 = vcmask 1046534
        %v881 = vsel %vm880, %v865, %v879
        %vm882 = vcmask 1047559
        %v883 = vsel %vm882, %v869, %v881
        %vm885 = vcmask 64512
        %v886 = vsel %vm885, %v883, -inf
        %887 = vmax.xlane.f32.xlu0 %v886
        %v888 = vpop.xlane.xlu0 %887
        %v890 = vlaneseq
        %v891 = vshrl.u32 %v890, 7
        %v892 = vsub.s32 0, %v891
        %v893 = vrot.slane %v888, %v892
        %v894 = vlaneseq
        %v895 = vshrl.u32 %v894, 7
        %v896 = vsub.s32 1, %v895
        %v897 = vrot.slane %v888, %v896
        %v898 = vlaneseq
        %v899 = vshrl.u32 %v898, 7
        %v900 = vsub.s32 2, %v899
        %v901 = vrot.slane %v888, %v900
        %v902 = vlaneseq
        %v903 = vshrl.u32 %v902, 7
        %v904 = vsub.s32 3, %v903
        %v905 = vrot.slane %v888, %v904
        %v906 = vlaneseq
        %v907 = vshrl.u32 %v906, 7
        %v908 = vsub.s32 4, %v907
        %v909 = vrot.slane %v888, %v908
        %v910 = vlaneseq
        %v911 = vshrl.u32 %v910, 7
        %v912 = vsub.s32 5, %v911
        %v913 = vrot.slane %v888, %v912
        %v914 = vlaneseq
        %v915 = vshrl.u32 %v914, 7
        %v916 = vsub.s32 6, %v915
        %v917 = vrot.slane %v888, %v916
        %v918 = vlaneseq
        %v919 = vshrl.u32 %v918, 7
        %v920 = vsub.s32 7, %v919
        %v921 = vrot.slane %v888, %v920
        %v930 = vsub.f32 %v806, %v893
        %v931 = vsub.f32 %v809, %v897
        %v932 = vsub.f32 %v812, %v901
        %v933 = vsub.f32 %v815, %v905
        %v934 = vsub.f32 %v818, %v909
        %v935 = vsub.f32 %v821, %v913
        %v936 = vsub.f32 %v824, %v917
        %v937 = vsub.f32 %v827, %v921
        %v938 = vmul.f32 %v930, 1.442695
        %v939 = vpow.pop %v938
        %v940 = vmul.f32 %v931, 1.442695
        %v941 = vpow.pop %v940
        %v942 = vmul.f32 %v932, 1.442695
        %v943 = vpow.pop %v942
        %v944 = vmul.f32 %v933, 1.442695
        %v945 = vpow.pop %v944
        %v946 = vmul.f32 %v934, 1.442695
        %v947 = vpow.pop %v946
        %v948 = vmul.f32 %v935, 1.442695
        %v949 = vpow.pop %v948
        %v950 = vmul.f32 %v936, 1.442695
        %v951 = vpow.pop %v950
        %v952 = vmul.f32 %v937, 1.442695
        %v953 = vpow.pop %v952
        %962 = vset.pattern.permute.xlu0 0
        %963 = vperm.xlu0 %962, %v939
        %v964 = vpop.permute.xlu0 %963
        %965 = vset.pattern.permute.xlu0 0
        %966 = vperm.xlu0 %965, %v941
        %v967 = vpop.permute.xlu0 %966
        %968 = vset.pattern.permute.xlu0 0
        %969 = vperm.xlu0 %968, %v943
        %v970 = vpop.permute.xlu0 %969
        %971 = vset.pattern.permute.xlu0 0
        %972 = vperm.xlu0 %971, %v945
        %v973 = vpop.permute.xlu0 %972
        %974 = vset.pattern.permute.xlu0 0
        %975 = vperm.xlu0 %974, %v947
        %v976 = vpop.permute.xlu0 %975
        %977 = vset.pattern.permute.xlu0 0
        %978 = vperm.xlu0 %977, %v949
        %v979 = vpop.permute.xlu0 %978
        %980 = vset.pattern.permute.xlu0 0
        %981 = vperm.xlu0 %980, %v951
        %v982 = vpop.permute.xlu0 %981
        %983 = vset.pattern.permute.xlu0 0
        %984 = vperm.xlu0 %983, %v953
        %v985 = vpop.permute.xlu0 %984
        %v986 = vlaneseq
        %v987 = vshrl.u32 %v986, 7
        %v988 = vsub.s32 %v837, %v987
        %v989 = vrot.slane %v964, %v988
        %v990 = vlaneseq
        %v991 = vshrl.u32 %v990, 7
        %v992 = vsub.s32 %v837, %v991
        %v993 = vrot.slane %v967, %v992
        %v994 = vlaneseq
        %v995 = vshrl.u32 %v994, 7
        %v996 = vsub.s32 %v837, %v995
        %v997 = vrot.slane %v970, %v996
        %v998 = vlaneseq
        %v999 = vshrl.u32 %v998, 7
        %v1000 = vsub.s32 %v837, %v999
        %v1001 = vrot.slane %v973, %v1000
        %v1002 = vlaneseq
        %v1003 = vshrl.u32 %v1002, 7
        %v1004 = vsub.s32 %v837, %v1003
        %v1005 = vrot.slane %v976, %v1004
        %v1006 = vlaneseq
        %v1007 = vshrl.u32 %v1006, 7
        %v1008 = vsub.s32 %v837, %v1007
        %v1009 = vrot.slane %v979, %v1008
        %v1010 = vlaneseq
        %v1011 = vshrl.u32 %v1010, 7
        %v1012 = vsub.s32 %v837, %v1011
        %v1013 = vrot.slane %v982, %v1012
        %v1014 = vlaneseq
        %v1015 = vshrl.u32 %v1014, 7
        %v1016 = vsub.s32 %v837, %v1015
        %v1017 = vrot.slane %v985, %v1016
        %v1018 = vsel %vm870, %v993, %v989
        %v1019 = vsel %vm872, %v997, %v1018
        %v1020 = vsel %vm874, %v1001, %v1019
        %v1021 = vsel %vm876, %v1005, %v1020
        %v1022 = vsel %vm878, %v1009, %v1021
        %v1023 = vsel %vm880, %v1013, %v1022
        %v1024 = vsel %vm882, %v1017, %v1023
        %v1026 = vsel %vm885, %v1024, 0.0
        %1027 = vadd.xlane.f32.xlu0 %v1026
        %v1028 = vpop.xlane.xlu0 %1027
        %v1029 = vrcp.pop %v1028
        %v1031 = vlaneseq
        %v1032 = vshrl.u32 %v1031, 7
        %v1033 = vsub.s32 0, %v1032
        %v1034 = vrot.slane %v1029, %v1033
        %v1035 = vlaneseq
        %v1036 = vshrl.u32 %v1035, 7
        %v1037 = vsub.s32 1, %v1036
        %v1038 = vrot.slane %v1029, %v1037
        %v1039 = vlaneseq
        %v1040 = vshrl.u32 %v1039, 7
        %v1041 = vsub.s32 2, %v1040
        %v1042 = vrot.slane %v1029, %v1041
        %v1043 = vlaneseq
        %v1044 = vshrl.u32 %v1043, 7
        %v1045 = vsub.s32 3, %v1044
        %v1046 = vrot.slane %v1029, %v1045
        %v1047 = vlaneseq
        %v1048 = vshrl.u32 %v1047, 7
        %v1049 = vsub.s32 4, %v1048
        %v1050 = vrot.slane %v1029, %v1049
        %v1051 = vlaneseq
        %v1052 = vshrl.u32 %v1051, 7
        %v1053 = vsub.s32 5, %v1052
        %v1054 = vrot.slane %v1029, %v1053
        %v1055 = vlaneseq
        %v1056 = vshrl.u32 %v1055, 7
        %v1057 = vsub.s32 6, %v1056
        %v1058 = vrot.slane %v1029, %v1057
        %v1059 = vlaneseq
        %v1060 = vshrl.u32 %v1059, 7
        %v1061 = vsub.s32 7, %v1060
        %v1062 = vrot.slane %v1029, %v1061
        %v1071 = vmul.f32 %v939, %v1034
        %v1072 = vmul.f32 %v941, %v1038
        %v1073 = vmul.f32 %v943, %v1042
        %v1074 = vmul.f32 %v945, %v1046
        %v1075 = vmul.f32 %v947, %v1050
        %v1076 = vmul.f32 %v949, %v1054
        %v1077 = vmul.f32 %v951, %v1058
        %v1078 = vmul.f32 %v953, %v1062
        %1080 = vset.pattern.permute.xlu0 0
        %1081 = vperm.xlu0 %1080, %v1071
        %v1082 = vpop.permute.xlu0 %1081
        %1085 = vset.pattern.permute.xlu0 0
        %1086 = vperm.xlu0 %1085, %v1072
        %v1087 = vpop.permute.xlu0 %1086
        %1090 = vset.pattern.permute.xlu0 0
        %1091 = vperm.xlu0 %1090, %v1073
        %v1092 = vpop.permute.xlu0 %1091
        %1095 = vset.pattern.permute.xlu0 0
        %1096 = vperm.xlu0 %1095, %v1074
        %v1097 = vpop.permute.xlu0 %1096
        %1100 = vset.pattern.permute.xlu0 0
        %1101 = vperm.xlu0 %1100, %v1075
        %v1102 = vpop.permute.xlu0 %1101
        %1105 = vset.pattern.permute.xlu0 0
        %1106 = vperm.xlu0 %1105, %v1076
        %v1107 = vpop.permute.xlu0 %1106
        %1110 = vset.pattern.permute.xlu0 0
        %1111 = vperm.xlu0 %1110, %v1077
        %v1112 = vpop.permute.xlu0 %1111
        %1115 = vset.pattern.permute.xlu0 0
        %1116 = vperm.xlu0 %1115, %v1078
        %v1117 = vpop.permute.xlu0 %1116
        %v1119 = vmul.f32 %v1082, %v449
        %v1120 = vmul.f32 %v1087, %v450
        %v1121 = vmul.f32 %v1092, %v451
        %v1122 = vmul.f32 %v1097, %v452
        %v1123 = vmul.f32 %v1102, %v453
        %v1124 = vmul.f32 %v1107, %v454
        %v1125 = vmul.f32 %v1112, %v455
        %v1126 = vmul.f32 %v1117, %v456
        %v1127 = vsel %vm467, %v1119, 0.0
        %v1128 = vrot.slane %v1127, 4
        %v1129 = vadd.f32 %v1127, %v1128
        %v1130 = vrot.slane %v1129, 2
        %v1131 = vadd.f32 %v1129, %v1130
        %v1132 = vrot.slane %v1131, 1
        %v1133 = vadd.f32 %v1131, %v1132
        %v1134 = vsel %vm467, %v1120, 0.0
        %v1135 = vrot.slane %v1134, 4
        %v1136 = vadd.f32 %v1134, %v1135
        %v1137 = vrot.slane %v1136, 2
        %v1138 = vadd.f32 %v1136, %v1137
        %v1139 = vrot.slane %v1138, 1
        %v1140 = vadd.f32 %v1138, %v1139
        %v1141 = vsel %vm467, %v1121, 0.0
        %v1142 = vrot.slane %v1141, 4
        %v1143 = vadd.f32 %v1141, %v1142
        %v1144 = vrot.slane %v1143, 2
        %v1145 = vadd.f32 %v1143, %v1144
        %v1146 = vrot.slane %v1145, 1
        %v1147 = vadd.f32 %v1145, %v1146
        %v1148 = vsel %vm467, %v1122, 0.0
        %v1149 = vrot.slane %v1148, 4
        %v1150 = vadd.f32 %v1148, %v1149
        %v1151 = vrot.slane %v1150, 2
        %v1152 = vadd.f32 %v1150, %v1151
        %v1153 = vrot.slane %v1152, 1
        %v1154 = vadd.f32 %v1152, %v1153
        %v1155 = vsel %vm467, %v1123, 0.0
        %v1156 = vrot.slane %v1155, 4
        %v1157 = vadd.f32 %v1155, %v1156
        %v1158 = vrot.slane %v1157, 2
        %v1159 = vadd.f32 %v1157, %v1158
        %v1160 = vrot.slane %v1159, 1
        %v1161 = vadd.f32 %v1159, %v1160
        %v1162 = vsel %vm467, %v1124, 0.0
        %v1163 = vrot.slane %v1162, 4
        %v1164 = vadd.f32 %v1162, %v1163
        %v1165 = vrot.slane %v1164, 2
        %v1166 = vadd.f32 %v1164, %v1165
        %v1167 = vrot.slane %v1166, 1
        %v1168 = vadd.f32 %v1166, %v1167
        %v1169 = vsel %vm467, %v1125, 0.0
        %v1170 = vrot.slane %v1169, 4
        %v1171 = vadd.f32 %v1169, %v1170
        %v1172 = vrot.slane %v1171, 2
        %v1173 = vadd.f32 %v1171, %v1172
        %v1174 = vrot.slane %v1173, 1
        %v1175 = vadd.f32 %v1173, %v1174
        %v1176 = vsel %vm467, %v1126, 0.0
        %v1177 = vrot.slane %v1176, 4
        %v1178 = vadd.f32 %v1176, %v1177
        %v1179 = vrot.slane %v1178, 2
        %v1180 = vadd.f32 %v1178, %v1179
        %v1181 = vrot.slane %v1180, 1
        %v1182 = vadd.f32 %v1180, %v1181
        %v1191 = vsel %vm870, %v1140, %v1133
        %v1192 = vsel %vm872, %v1147, %v1191
        %v1193 = vsel %vm874, %v1154, %v1192
        %v1194 = vsel %vm876, %v1161, %v1193
        %v1195 = vsel %vm878, %v1168, %v1194
        %v1196 = vsel %vm880, %v1175, %v1195
        %v1197 = vsel %vm882, %v1182, %v1196
        %1199 = vst.msk [vmem:[%s427] sm:$0xff] %vm467, %v1197
        %v1200 = vlaneseq
        %v1201 = vshrl.u32 %v1200, 7
        %v1202 = vsub.s32 %v837, %v1201
        %v1203 = vrot.slane %v1082, %v1202
        %v1204 = vlaneseq
        %v1205 = vshrl.u32 %v1204, 7
        %v1206 = vsub.s32 %v837, %v1205
        %v1207 = vrot.slane %v1087, %v1206
        %v1208 = vlaneseq
        %v1209 = vshrl.u32 %v1208, 7
        %v1210 = vsub.s32 %v837, %v1209
        %v1211 = vrot.slane %v1092, %v1210
        %v1212 = vlaneseq
        %v1213 = vshrl.u32 %v1212, 7
        %v1214 = vsub.s32 %v837, %v1213
        %v1215 = vrot.slane %v1097, %v1214
        %v1216 = vlaneseq
        %v1217 = vshrl.u32 %v1216, 7
        %v1218 = vsub.s32 %v837, %v1217
        %v1219 = vrot.slane %v1102, %v1218
        %v1220 = vlaneseq
        %v1221 = vshrl.u32 %v1220, 7
        %v1222 = vsub.s32 %v837, %v1221
        %v1223 = vrot.slane %v1107, %v1222
        %v1224 = vlaneseq
        %v1225 = vshrl.u32 %v1224, 7
        %v1226 = vsub.s32 %v837, %v1225
        %v1227 = vrot.slane %v1112, %v1226
        %v1228 = vlaneseq
        %v1229 = vshrl.u32 %v1228, 7
        %v1230 = vsub.s32 %v837, %v1229
        %v1231 = vrot.slane %v1117, %v1230
        %v1232 = vsel %vm870, %v1207, %v1203
        %v1233 = vsel %vm872, %v1211, %v1232
        %v1234 = vsel %vm874, %v1215, %v1233
        %v1235 = vsel %vm876, %v1219, %v1234
        %v1236 = vsel %vm878, %v1223, %v1235
        %v1237 = vsel %vm880, %v1227, %v1236
        %v1238 = vsel %vm882, %v1231, %v1237
        %1240 = vst.msk [vmem:[%s439] sm:$0xff] %vm885, %v1238
        %s1241 = sand.u32 %s200, 1
        %s1242 = scalar_lea.sflag [#allocation4], %s1241
        %s1243 = sand.u32 %s200, 1
        %s1244 = smul.addr %s1243, 8
        %s1245 = scalar_lea.vmem [#allocation11], %s1244
        %p1246 = scmp.lt.s32.totalorder %s30, 1
        %s1247 = scalar_select %p1246, %s30, 1
        %s1248 = smul.addr %s1247, 8
        %s1249 = scalar_lea.vmem %s8, %s1248
        // Predicated region
        $region69: #{tpu_custom_call.1} parent=47 // pred_check
          %p1250 = pneg %p210
        $region70: #{tpu_custom_call.1} parent=47 // pred_check_branch
          %1252 = sbr.rel (%p1250) target = $region72
        $region71: #{tpu_custom_call.1} parent=47 // pred_region
          %s1254 = ssub.s32 128, 128
          %1255 = vsyncadd %s1242, %s1254
          %s1256 = smul.addr %s30, 128
          %s1257 = scalar_lea.hbm %s7, %s1256
          %s1259 = sshll.u32 %s1245, 4
          %s1260 = int_to_ptr.vmem [resolvable:$true] %s1259
          %1262 = dma.vmem_to_hbm [thread:$0]  %s1260, 128, %s1257, %s1242
        $region72: #{tpu_custom_call.1} parent=47 // pred_fallthru
          _
        // Predicated region
        $region73: #{tpu_custom_call.1} parent=47 // pred_check
          %p1263 = pneg %p236
        $region74: #{tpu_custom_call.1} parent=47 // pred_check_branch
          %1265 = sbr.rel (%p1263) target = $region76
        $region75: #{tpu_custom_call.1} parent=47 // pred_region
          _
        $region76: #{tpu_custom_call.1} parent=47 // pred_fallthru
          _
      $region48: #{tpu_custom_call.1} parent=5 // pred_fallthru
        _
      %p1266 = scmp.le.s32.totalorder 2, %s25
      // Predicated region
      $region77: #{tpu_custom_call.1} parent=5 // pred_check
        %p1267 = pneg %p1266
      $region78: #{tpu_custom_call.1} parent=5 // pred_check_branch
        %1269 = sbr.rel (%p1267) target = $region80
      $region79: #{tpu_custom_call.1} parent=5 // pred_region
        %s1270 = ssub.s32 %s25, 2
        // Predicated region
        $region81: #{tpu_custom_call.1} parent=79 // pred_check
          %p1271 = pneg %p216
        $region82: #{tpu_custom_call.1} parent=79 // pred_check_branch
          %1273 = sbr.rel (%p1271) target = $region84
        $region83: #{tpu_custom_call.1} parent=79 // pred_region
          %s1274 = sand.u32 %s201, 1
          %s1275 = scalar_lea.sflag [#allocation4], %s1274
          %s1276 = sand.u32 %s201, 1
          %s1277 = smul.addr %s1276, 8
          %s1278 = scalar_lea.vmem [#allocation11], %s1277
          %1279 = dma.done %s1275, 128
        $region84: #{tpu_custom_call.1} parent=79 // pred_fallthru
          _
        // Predicated region
        $region85: #{tpu_custom_call.1} parent=79 // pred_check
          %p1280 = pneg %p242
        $region86: #{tpu_custom_call.1} parent=79 // pred_check_branch
          %1282 = sbr.rel (%p1280) target = $region88
        $region87: #{tpu_custom_call.1} parent=79 // pred_region
          %p1283 = scmp.lt.s32.totalorder %s31, 1
          %s1284 = scalar_select %p1283, %s31, 1
          %s1285 = smul.addr %s1284, 8
          %s1286 = scalar_lea.vmem %s8, %s1285
        $region88: #{tpu_custom_call.1} parent=79 // pred_fallthru
          _
      $region80: #{tpu_custom_call.1} parent=5 // pred_fallthru
        _
    $region6: #{tpu_custom_call.1} parent=1 // loop_footer
      %s29 = sadd.s32 1, %s25
    $region7: #{tpu_custom_call.1} parent=1 // loop_footer_branch
      %24 = sbr.rel target = $region3
    $region8: #{tpu_custom_call.1} parent=1 // loop_exit
      _
    %1287 = vsyncpa [#allocation3], 1
    %s1288 = scalar_lea.sflag [#allocation3], 1
    %1289 = vsyncpa %s1288, 1
    %1290 = vsyncpa [#allocation6], 1
    %s1291 = scalar_lea.sflag [#allocation6], 1
    %1292 = vsyncpa %s1291, 1
    %1293 = vsyncpa [#allocation9], 1
    %1294 = vsyncpa [#allocation4], 1
    %s1295 = scalar_lea.sflag [#allocation4], 1
    %1296 = vsyncpa %s1295, 1

</llo_original>
